<compile_context>
chip_gen: v5e
topology: v5e:2x2
jax: 0.10.0
libtpu: 0.0.40
codegen_flags: <defaults>
</compile_context>

<pallas_src>
import functools

import jax
import jax.numpy as jnp
from jax import lax
from jax.experimental import pallas as pl
from jax.experimental.pallas import tpu as pltpu

# ----------------------------- model configuration -----------------------------
BATCH = 8
IN_FEATURES = 16
EMBED_DIM = 32
HIDDEN_SIZES = [32, 32]          # two attention blocks + two TabM (BatchEnsemble) layers
NUM_HEADS = 4                    # seq_len == 1 -> attention weights are trivially 1
K_ENSEMBLE = 8
OUTPUT_DIM = 1
LN_EPS = 1e-5
LAYER_DIMS = tuple([EMBED_DIM] + HIDDEN_SIZES)


# --------------------------------- Pallas kernel --------------------------------
def _forward_kernel(num_attn, num_tabm, k_ens,
                    x_ref, we_ref, mats_ref, vec_ref, tabm_ref, out_ref):
    """Fused forward pass. Whole problem resident in VMEM (grid=(1,))."""
    x = x_ref[...]                                     # (B, F)
    vec = vec_ref[...]                                 # (1 + 3*A + 2, E)
    mats = mats_ref[...]                               # (A + L, E, E)
    tabm = tabm_ref[...]                               # (L, 3, K, E)
    bsz = x.shape[0]

    # ---- feature embedding (MXU matmul) ----
    h = jnp.dot(x, we_ref[...], preferred_element_type=jnp.float32) + vec[0:1, :]

    # ---- attention blocks: seq_len==1 => softmax==1 => one fused linear, post-norm LN ----
    inv_e = 1.0 / float(EMBED_DIM)
    for l in range(num_attn):
        w_blk = mats[l]                                # (E, E)  = wv @ wo (folded host-side)
        b_blk = vec[1 + 3 * l: 2 + 3 * l, :]           # (1, E)
        gamma = vec[2 + 3 * l: 3 + 3 * l, :]
        beta = vec[3 + 3 * l: 4 + 3 * l, :]
        y = h + jnp.dot(h, w_blk, preferred_element_type=jnp.float32) + b_blk
        # single pass over y: two lane reductions (XLU) + one rsqrt (EUP)
        s1 = jnp.sum(y, axis=-1, keepdims=True)
        s2 = jnp.sum(y * y, axis=-1, keepdims=True)
        mu = s1 * inv_e
        var = s2 * inv_e - mu * mu
        h = (y - mu) * lax.rsqrt(var + LN_EPS) * gamma + beta

    # ---- TabM BatchEnsemble layers as flattened 2-D MXU matmuls ----
    z3 = None
    for l in range(num_tabm):
        in_dim = LAYER_DIMS[l]
        out_dim = LAYER_DIMS[l + 1]
        r = tabm[l, 0, :, :in_dim]                     # (K, in)
        if l == 0:
            # fuse the ensemble broadcast with the r-scale: (B,1,E) * (1,K,E)
            zr3 = h[:, None, :] * r[None, :, :]
        else:
            zr3 = z3 * r[None, :, :]
        w = mats[num_attn + l][:in_dim, :out_dim]      # (in, out)
        zm = jnp.dot(zr3.reshape(bsz * k_ens, in_dim), w,
                     preferred_element_type=jnp.float32)          # (B*K, out)
        s = tabm[l, 1, :, :out_dim]                    # (K, out)
        b = tabm[l, 2, :, :out_dim]                    # (K, out)
        z3 = jnp.maximum(zm.reshape(bsz, k_ens, out_dim) * s[None] + b[None], 0.0)

    # ---- fold the ensemble mean through the shared output head (exact) ----
    zbar = jnp.mean(z3, axis=1)                        # (B, H_last)
    wrow = vec[1 + 3 * num_attn: 2 + 3 * num_attn, :LAYER_DIMS[-1]]   # (1, H_last) = wout.T
    bout = vec[2 + 3 * num_attn: 3 + 3 * num_attn, 0:OUTPUT_DIM]      # (1, 1)
    out_ref[...] = jnp.sum(zbar * wrow, axis=-1, keepdims=True) + bout


def _full_spec(shape):
    return pl.BlockSpec(shape, lambda i, s=shape: (0,) * len(s))


def tabm_with_attention(x, we, mats, vec, tabm):
    """Wrapper: whole (tiny) problem lives in VMEM, grid=(1,)."""
    operands = (x, we, mats, vec, tabm)
    kernel = functools.partial(_forward_kernel,
                               len(HIDDEN_SIZES), len(HIDDEN_SIZES), K_ENSEMBLE)
    out_shape = jax.ShapeDtypeStruct((x.shape[0], OUTPUT_DIM), jnp.float32)
    return pl.pallas_call(
        kernel,
        grid=(1,),
        in_specs=[_full_spec(a.shape) for a in operands],
        out_specs=_full_spec((x.shape[0], OUTPUT_DIM)),
        out_shape=out_shape,
        compiler_params=pltpu.CompilerParams(dimension_semantics=("arbitrary",)),
    )(*operands)


# ------------------------------ parameter creation ------------------------------
def init_params(key):
    """Deterministic synthetic parameters matching the module's shapes (unfused)."""
    def nrm(k, shape, scale=0.1):
        return (scale * jax.random.normal(k, shape)).astype(jnp.float32)

    keys = iter(jax.random.split(key, 64))
    p = {}
    p["we"] = nrm(next(keys), (IN_FEATURES, EMBED_DIM))
    p["be"] = nrm(next(keys), (1, EMBED_DIM))

    p["attn"] = []
    for _ in HIDDEN_SIZES:
        p["attn"].append(dict(
            wv=nrm(next(keys), (EMBED_DIM, EMBED_DIM)),
            bv=nrm(next(keys), (1, EMBED_DIM)),
            wo=nrm(next(keys), (EMBED_DIM, EMBED_DIM)),
            bo=nrm(next(keys), (1, EMBED_DIM)),
            g=jnp.ones((1, EMBED_DIM), jnp.float32),
            b=jnp.zeros((1, EMBED_DIM), jnp.float32),
        ))

    p["tabm"] = []
    for i in range(len(LAYER_DIMS) - 1):
        p["tabm"].append(dict(
            r=jnp.ones((K_ENSEMBLE, LAYER_DIMS[i]), jnp.float32),      # initialize_to_1=True
            w=nrm(next(keys), (LAYER_DIMS[i], LAYER_DIMS[i + 1])),
            s=jnp.ones((K_ENSEMBLE, LAYER_DIMS[i + 1]), jnp.float32),  # initialize_to_1=True
            b=nrm(next(keys), (K_ENSEMBLE, LAYER_DIMS[i + 1])),
        ))

    p["wout"] = nrm(next(keys), (HIDDEN_SIZES[-1], OUTPUT_DIM))
    p["bout"] = nrm(next(keys), (1, OUTPUT_DIM))
    return p


def pack_params(p):
    """Host-side packing + algebraic folding (attention linears, output head row)."""
    E = EMBED_DIM
    attn_w, attn_vec_rows = [], []
    for blk in p["attn"]:
        w_blk = blk["wv"] @ blk["wo"]                      # (E, E)   exact for seq_len == 1
        b_blk = blk["bv"] @ blk["wo"] + blk["bo"]          # (1, E)
        attn_w.append(w_blk)
        attn_vec_rows += [b_blk, blk["g"], blk["b"]]

    mats = jnp.stack(attn_w + [lay["w"] for lay in p["tabm"]], axis=0)   # (A+L, E, E)

    wout_row = p["wout"].T                                  # (1, H_last)
    wout_row = jnp.pad(wout_row, ((0, 0), (0, E - wout_row.shape[1])))
    bout_row = jnp.pad(p["bout"], ((0, 0), (0, E - p["bout"].shape[1])))
    vec = jnp.concatenate([p["be"]] + attn_vec_rows + [wout_row, bout_row], axis=0)

    tabm = jnp.stack([jnp.stack([lay["r"], lay["s"], lay["b"]], axis=0)
                      for lay in p["tabm"]], axis=0)        # (L, 3, K, E)
    return p["we"], mats, vec, tabm


# ------------------------------ plain-JAX reference ------------------------------
def reference(x, p):
    """Unfused reference (mirrors the PyTorch module) to validate the algebraic folds."""
    h = x @ p["we"] + p["be"]
    for blk in p["attn"]:
        v = h @ blk["wv"] + blk["bv"]
        attn = v @ blk["wo"] + blk["bo"]
        y = h + attn
        mu = y.mean(-1, keepdims=True)
        var = ((y - mu) ** 2).mean(-1, keepdims=True)
        h = (y - mu) / jnp.sqrt(var + LN_EPS) * blk["g"] + blk["b"]
    z = jnp.repeat(h[:, None, :], K_ENSEMBLE, axis=1)
    for lay in p["tabm"]:
        z = jnp.maximum(jnp.einsum("bki,io->bko", z * lay["r"][None], lay["w"])
                        * lay["s"][None] + lay["b"][None], 0.0)
    o = jnp.einsum("bkh,ho->bko", z, p["wout"]) + p["bout"][None]
    return o.mean(axis=1)


# ------------------------------------- main -------------------------------------
if __name__ == "__main__":
    key = jax.random.PRNGKey(0)
    kx, kp = jax.random.split(key)
    x = jax.random.normal(kx, (BATCH, IN_FEATURES), dtype=jnp.float32)

    params = init_params(kp)
    packed = pack_params(params)

    out = tabm_with_attention(x, *packed)
    out = jax.block_until_ready(out)

    ref = reference(x, params)
    assert out.shape == (BATCH, OUTPUT_DIM), out.shape
    assert jnp.allclose(out, ref, rtol=1e-4, atol=1e-4), (out, ref)

    print("KERNEL_OK")
</pallas_src>

<mosaic_0001>
module attributes {stable_mosaic.version = 11 : i64} {
  func.func @_forward_kernel(%arg0: i32, %arg1: memref<8x16xf32, #tpu.memory_space<vmem>>, %arg2: memref<16x32xf32, #tpu.memory_space<vmem>>, %arg3: memref<4x32x32xf32, #tpu.memory_space<vmem>>, %arg4: memref<9x32xf32, #tpu.memory_space<vmem>>, %arg5: memref<2x3x8x32xf32, #tpu.memory_space<vmem>>, %arg6: memref<8x1xf32, #tpu.memory_space<vmem>>) attributes {dimension_semantics = [#tpu.dimension_semantics<arbitrary>], iteration_bounds = array<i64: 1>, scalar_prefetch = 0 : i64, scratch_operands = 0 : i64, tpu.core_type = #tpu.core_type<tc>, window_params = [{pipeline_mode = #tpu.pipeline_mode<synchronous>, transform_indices = @transform_0, window_bounds = array<i64: 8, 16>}, {pipeline_mode = #tpu.pipeline_mode<synchronous>, transform_indices = @transform_1, window_bounds = array<i64: 16, 32>}, {pipeline_mode = #tpu.pipeline_mode<synchronous>, transform_indices = @transform_2, window_bounds = array<i64: 4, 32, 32>}, {pipeline_mode = #tpu.pipeline_mode<synchronous>, transform_indices = @transform_3, window_bounds = array<i64: 9, 32>}, {pipeline_mode = #tpu.pipeline_mode<synchronous>, transform_indices = @transform_4, window_bounds = array<i64: 2, 3, 8, 32>}, {pipeline_mode = #tpu.pipeline_mode<synchronous>, transform_indices = @transform_5, window_bounds = array<i64: 8, 1>}]} {
    %c0 = arith.constant 0 : index
    %c0_0 = arith.constant 0 : index
    %0 = vector.load %arg1[%c0, %c0_0] : memref<8x16xf32, #tpu.memory_space<vmem>>, vector<8x16xf32>
    %c0_1 = arith.constant 0 : index
    %c0_2 = arith.constant 0 : index
    %1 = vector.load %arg4[%c0_1, %c0_2] : memref<9x32xf32, #tpu.memory_space<vmem>>, vector<9x32xf32>
    %c0_3 = arith.constant 0 : index
    %c0_4 = arith.constant 0 : index
    %c0_5 = arith.constant 0 : index
    %2 = vector.load %arg3[%c0_3, %c0_4, %c0_5] : memref<4x32x32xf32, #tpu.memory_space<vmem>>, vector<4x32x32xf32>
    %c0_6 = arith.constant 0 : index
    %c0_7 = arith.constant 0 : index
    %c0_8 = arith.constant 0 : index
    %c0_9 = arith.constant 0 : index
    %3 = vector.load %arg5[%c0_6, %c0_7, %c0_8, %c0_9] : memref<2x3x8x32xf32, #tpu.memory_space<vmem>>, vector<2x3x8x32xf32>
    %c0_10 = arith.constant 0 : index
    %c0_11 = arith.constant 0 : index
    %4 = vector.load %arg2[%c0_10, %c0_11] : memref<16x32xf32, #tpu.memory_space<vmem>>, vector<16x32xf32>
    %cst = arith.constant dense<0.000000e+00> : vector<8x32xf32>
    %5 = tpu.matmul %0, %4, %cst {dimension_numbers = #tpu.dot_dimension_numbers<[1], [0], [0], [1], [0, 0, 1, 1], [], []>} : vector<8x16xf32>, vector<16x32xf32>, vector<8x32xf32> -> vector<8x32xf32>
    %6 = vector.extract_strided_slice %1 {offsets = [0, 0], sizes = [1, 32], strides = [1, 1]} : vector<9x32xf32> to vector<1x32xf32>
    %7 = vector.broadcast %6 : vector<1x32xf32> to vector<8x32xf32>
    %8 = arith.addf %5, %7 : vector<8x32xf32>
    %9 = vector.extract_strided_slice %2 {offsets = [0, 0, 0], sizes = [1, 32, 32], strides = [1, 1, 1]} : vector<4x32x32xf32> to vector<1x32x32xf32>
    %10 = vector.shape_cast %9 : vector<1x32x32xf32> to vector<32x32xf32>
    %11 = vector.extract_strided_slice %1 {offsets = [1, 0], sizes = [1, 32], strides = [1, 1]} : vector<9x32xf32> to vector<1x32xf32>
    %12 = vector.extract_strided_slice %1 {offsets = [2, 0], sizes = [1, 32], strides = [1, 1]} : vector<9x32xf32> to vector<1x32xf32>
    %13 = vector.extract_strided_slice %1 {offsets = [3, 0], sizes = [1, 32], strides = [1, 1]} : vector<9x32xf32> to vector<1x32xf32>
    %cst_12 = arith.constant dense<0.000000e+00> : vector<8x32xf32>
    %14 = tpu.matmul %8, %10, %cst_12 {dimension_numbers = #tpu.dot_dimension_numbers<[1], [0], [0], [1], [0, 0, 1, 1], [], []>} : vector<8x32xf32>, vector<32x32xf32>, vector<8x32xf32> -> vector<8x32xf32>
    %15 = arith.addf %8, %14 : vector<8x32xf32>
    %16 = vector.broadcast %11 : vector<1x32xf32> to vector<8x32xf32>
    %17 = arith.addf %15, %16 : vector<8x32xf32>
    %cst_13 = arith.constant dense<0.000000e+00> : vector<8xf32>
    %18 = vector.multi_reduction <add>, %17, %cst_13 [1] : vector<8x32xf32> to vector<8xf32>
    %19 = vector.shape_cast %18 : vector<8xf32> to vector<8x1xf32>
    %20 = arith.mulf %17, %17 : vector<8x32xf32>
    %cst_14 = arith.constant dense<0.000000e+00> : vector<8xf32>
    %21 = vector.multi_reduction <add>, %20, %cst_14 [1] : vector<8x32xf32> to vector<8xf32>
    %22 = vector.shape_cast %21 : vector<8xf32> to vector<8x1xf32>
    %cst_15 = arith.constant 3.125000e-02 : f32
    %23 = vector.broadcast %cst_15 : f32 to vector<8x1xf32>
    %24 = arith.mulf %19, %23 : vector<8x1xf32>
    %cst_16 = arith.constant 3.125000e-02 : f32
    %25 = vector.broadcast %cst_16 : f32 to vector<8x1xf32>
    %26 = arith.mulf %22, %25 : vector<8x1xf32>
    %27 = arith.mulf %24, %24 : vector<8x1xf32>
    %28 = arith.subf %26, %27 : vector<8x1xf32>
    %29 = vector.broadcast %24 : vector<8x1xf32> to vector<8x32xf32>
    %30 = arith.subf %17, %29 : vector<8x32xf32>
    %cst_17 = arith.constant 9.99999974E-6 : f32
    %31 = vector.broadcast %cst_17 : f32 to vector<8x1xf32>
    %32 = arith.addf %28, %31 : vector<8x1xf32>
    %33 = math.rsqrt %32 : vector<8x1xf32>
    %34 = vector.broadcast %33 : vector<8x1xf32> to vector<8x32xf32>
    %35 = arith.mulf %30, %34 : vector<8x32xf32>
    %36 = vector.broadcast %12 : vector<1x32xf32> to vector<8x32xf32>
    %37 = arith.mulf %35, %36 : vector<8x32xf32>
    %38 = vector.broadcast %13 : vector<1x32xf32> to vector<8x32xf32>
    %39 = arith.addf %37, %38 : vector<8x32xf32>
    %40 = vector.extract_strided_slice %2 {offsets = [1, 0, 0], sizes = [1, 32, 32], strides = [1, 1, 1]} : vector<4x32x32xf32> to vector<1x32x32xf32>
    %41 = vector.shape_cast %40 : vector<1x32x32xf32> to vector<32x32xf32>
    %42 = vector.extract_strided_slice %1 {offsets = [4, 0], sizes = [1, 32], strides = [1, 1]} : vector<9x32xf32> to vector<1x32xf32>
    %43 = vector.extract_strided_slice %1 {offsets = [5, 0], sizes = [1, 32], strides = [1, 1]} : vector<9x32xf32> to vector<1x32xf32>
    %44 = vector.extract_strided_slice %1 {offsets = [6, 0], sizes = [1, 32], strides = [1, 1]} : vector<9x32xf32> to vector<1x32xf32>
    %cst_18 = arith.constant dense<0.000000e+00> : vector<8x32xf32>
    %45 = tpu.matmul %39, %41, %cst_18 {dimension_numbers = #tpu.dot_dimension_numbers<[1], [0], [0], [1], [0, 0, 1, 1], [], []>} : vector<8x32xf32>, vector<32x32xf32>, vector<8x32xf32> -> vector<8x32xf32>
    %46 = arith.addf %39, %45 : vector<8x32xf32>
    %47 = vector.broadcast %42 : vector<1x32xf32> to vector<8x32xf32>
    %48 = arith.addf %46, %47 : vector<8x32xf32>
    %cst_19 = arith.constant dense<0.000000e+00> : vector<8xf32>
    %49 = vector.multi_reduction <add>, %48, %cst_19 [1] : vector<8x32xf32> to vector<8xf32>
    %50 = vector.shape_cast %49 : vector<8xf32> to vector<8x1xf32>
    %51 = arith.mulf %48, %48 : vector<8x32xf32>
    %cst_20 = arith.constant dense<0.000000e+00> : vector<8xf32>
    %52 = vector.multi_reduction <add>, %51, %cst_20 [1] : vector<8x32xf32> to vector<8xf32>
    %53 = vector.shape_cast %52 : vector<8xf32> to vector<8x1xf32>
    %cst_21 = arith.constant 3.125000e-02 : f32
    %54 = vector.broadcast %cst_21 : f32 to vector<8x1xf32>
    %55 = arith.mulf %50, %54 : vector<8x1xf32>
    %cst_22 = arith.constant 3.125000e-02 : f32
    %56 = vector.broadcast %cst_22 : f32 to vector<8x1xf32>
    %57 = arith.mulf %53, %56 : vector<8x1xf32>
    %58 = arith.mulf %55, %55 : vector<8x1xf32>
    %59 = arith.subf %57, %58 : vector<8x1xf32>
    %60 = vector.broadcast %55 : vector<8x1xf32> to vector<8x32xf32>
    %61 = arith.subf %48, %60 : vector<8x32xf32>
    %cst_23 = arith.constant 9.99999974E-6 : f32
    %62 = vector.broadcast %cst_23 : f32 to vector<8x1xf32>
    %63 = arith.addf %59, %62 : vector<8x1xf32>
    %64 = math.rsqrt %63 : vector<8x1xf32>
    %65 = vector.broadcast %64 : vector<8x1xf32> to vector<8x32xf32>
    %66 = arith.mulf %61, %65 : vector<8x32xf32>
    %67 = vector.broadcast %43 : vector<1x32xf32> to vector<8x32xf32>
    %68 = arith.mulf %66, %67 : vector<8x32xf32>
    %69 = vector.broadcast %44 : vector<1x32xf32> to vector<8x32xf32>
    %70 = arith.addf %68, %69 : vector<8x32xf32>
    %71 = vector.extract_strided_slice %3 {offsets = [0, 0, 0, 0], sizes = [1, 1, 8, 32], strides = [1, 1, 1, 1]} : vector<2x3x8x32xf32> to vector<1x1x8x32xf32>
    %72 = vector.shape_cast %71 : vector<1x1x8x32xf32> to vector<8x32xf32>
    %73 = vector.shape_cast %70 : vector<8x32xf32> to vector<8x1x32xf32>
    %74 = vector.shape_cast %72 : vector<8x32xf32> to vector<1x8x32xf32>
    %75 = vector.broadcast %73 : vector<8x1x32xf32> to vector<8x8x32xf32>
    %76 = vector.broadcast %74 : vector<1x8x32xf32> to vector<8x8x32xf32>
    %77 = arith.mulf %75, %76 : vector<8x8x32xf32>
    %78 = vector.extract_strided_slice %2 {offsets = [2, 0, 0], sizes = [1, 32, 32], strides = [1, 1, 1]} : vector<4x32x32xf32> to vector<1x32x32xf32>
    %79 = vector.shape_cast %78 : vector<1x32x32xf32> to vector<32x32xf32>
    %80 = vector.shape_cast %77 : vector<8x8x32xf32> to vector<64x32xf32>
    %cst_24 = arith.constant dense<0.000000e+00> : vector<64x32xf32>
    %81 = tpu.matmul %80, %79, %cst_24 {dimension_numbers = #tpu.dot_dimension_numbers<[1], [0], [0], [1], [0, 0, 1, 1], [], []>} : vector<64x32xf32>, vector<32x32xf32>, vector<64x32xf32> -> vector<64x32xf32>
    %82 = vector.extract_strided_slice %3 {offsets = [0, 1, 0, 0], sizes = [1, 1, 8, 32], strides = [1, 1, 1, 1]} : vector<2x3x8x32xf32> to vector<1x1x8x32xf32>
    %83 = vector.shape_cast %82 : vector<1x1x8x32xf32> to vector<8x32xf32>
    %84 = vector.extract_strided_slice %3 {offsets = [0, 2, 0, 0], sizes = [1, 1, 8, 32], strides = [1, 1, 1, 1]} : vector<2x3x8x32xf32> to vector<1x1x8x32xf32>
    %85 = vector.shape_cast %84 : vector<1x1x8x32xf32> to vector<8x32xf32>
    %86 = vector.shape_cast %81 : vector<64x32xf32> to vector<8x8x32xf32>
    %87 = vector.shape_cast %83 : vector<8x32xf32> to vector<1x8x32xf32>
    %88 = vector.broadcast %87 : vector<1x8x32xf32> to vector<8x8x32xf32>
    %89 = arith.mulf %86, %88 : vector<8x8x32xf32>
    %90 = vector.shape_cast %85 : vector<8x32xf32> to vector<1x8x32xf32>
    %91 = vector.broadcast %90 : vector<1x8x32xf32> to vector<8x8x32xf32>
    %92 = arith.addf %89, %91 : vector<8x8x32xf32>
    %cst_25 = arith.constant 0.000000e+00 : f32
    %93 = vector.broadcast %cst_25 : f32 to vector<8x8x32xf32>
    %94 = arith.maximumf %92, %93 : vector<8x8x32xf32>
    %95 = vector.extract_strided_slice %3 {offsets = [1, 0, 0, 0], sizes = [1, 1, 8, 32], strides = [1, 1, 1, 1]} : vector<2x3x8x32xf32> to vector<1x1x8x32xf32>
    %96 = vector.shape_cast %95 : vector<1x1x8x32xf32> to vector<8x32xf32>
    %97 = vector.shape_cast %96 : vector<8x32xf32> to vector<1x8x32xf32>
    %98 = vector.broadcast %97 : vector<1x8x32xf32> to vector<8x8x32xf32>
    %99 = arith.mulf %94, %98 : vector<8x8x32xf32>
    %100 = vector.extract_strided_slice %2 {offsets = [3, 0, 0], sizes = [1, 32, 32], strides = [1, 1, 1]} : vector<4x32x32xf32> to vector<1x32x32xf32>
    %101 = vector.shape_cast %100 : vector<1x32x32xf32> to vector<32x32xf32>
    %102 = vector.shape_cast %99 : vector<8x8x32xf32> to vector<64x32xf32>
    %cst_26 = arith.constant dense<0.000000e+00> : vector<64x32xf32>
    %103 = tpu.matmul %102, %101, %cst_26 {dimension_numbers = #tpu.dot_dimension_numbers<[1], [0], [0], [1], [0, 0, 1, 1], [], []>} : vector<64x32xf32>, vector<32x32xf32>, vector<64x32xf32> -> vector<64x32xf32>
    %104 = vector.extract_strided_slice %3 {offsets = [1, 1, 0, 0], sizes = [1, 1, 8, 32], strides = [1, 1, 1, 1]} : vector<2x3x8x32xf32> to vector<1x1x8x32xf32>
    %105 = vector.shape_cast %104 : vector<1x1x8x32xf32> to vector<8x32xf32>
    %106 = vector.extract_strided_slice %3 {offsets = [1, 2, 0, 0], sizes = [1, 1, 8, 32], strides = [1, 1, 1, 1]} : vector<2x3x8x32xf32> to vector<1x1x8x32xf32>
    %107 = vector.shape_cast %106 : vector<1x1x8x32xf32> to vector<8x32xf32>
    %108 = vector.shape_cast %103 : vector<64x32xf32> to vector<8x8x32xf32>
    %109 = vector.shape_cast %105 : vector<8x32xf32> to vector<1x8x32xf32>
    %110 = vector.broadcast %109 : vector<1x8x32xf32> to vector<8x8x32xf32>
    %111 = arith.mulf %108, %110 : vector<8x8x32xf32>
    %112 = vector.shape_cast %107 : vector<8x32xf32> to vector<1x8x32xf32>
    %113 = vector.broadcast %112 : vector<1x8x32xf32> to vector<8x8x32xf32>
    %114 = arith.addf %111, %113 : vector<8x8x32xf32>
    %cst_27 = arith.constant 0.000000e+00 : f32
    %115 = vector.broadcast %cst_27 : f32 to vector<8x8x32xf32>
    %116 = arith.maximumf %114, %115 : vector<8x8x32xf32>
    %cst_28 = arith.constant dense<0.000000e+00> : vector<8x32xf32>
    %117 = vector.multi_reduction <add>, %116, %cst_28 [1] : vector<8x8x32xf32> to vector<8x32xf32>
    %cst_29 = arith.constant 8.000000e+00 : f32
    %118 = vector.broadcast %cst_29 : f32 to vector<8x32xf32>
    %119 = arith.divf %117, %118 : vector<8x32xf32>
    %120 = vector.extract_strided_slice %1 {offsets = [7, 0], sizes = [1, 32], strides = [1, 1]} : vector<9x32xf32> to vector<1x32xf32>
    %121 = vector.extract_strided_slice %1 {offsets = [8, 0], sizes = [1, 1], strides = [1, 1]} : vector<9x32xf32> to vector<1x1xf32>
    %122 = vector.broadcast %120 : vector<1x32xf32> to vector<8x32xf32>
    %123 = arith.mulf %119, %122 : vector<8x32xf32>
    %cst_30 = arith.constant dense<0.000000e+00> : vector<8xf32>
    %124 = vector.multi_reduction <add>, %123, %cst_30 [1] : vector<8x32xf32> to vector<8xf32>
    %125 = vector.shape_cast %124 : vector<8xf32> to vector<8x1xf32>
    %126 = vector.broadcast %121 : vector<1x1xf32> to vector<8x1xf32>
    %127 = arith.addf %125, %126 : vector<8x1xf32>
    %c0_31 = arith.constant 0 : index
    %c0_32 = arith.constant 0 : index
    %128 = vector.load %arg6[%c0_31, %c0_32] : memref<8x1xf32, #tpu.memory_space<vmem>>, vector<8x1xf32>
    tpu.vector_store %arg6[%c0_31, %c0_32], %127 {strides = array<i32>} : memref<8x1xf32, #tpu.memory_space<vmem>>, vector<8x1xf32>,
    return
  }
  func.func @transform_0(%arg0: i32) -> (i32, i32) {
    %c0_i32 = arith.constant 0 : i32
    %c0_i32_0 = arith.constant 0 : i32
    %c0_i32_1 = arith.constant 0 : i32
    return %c0_i32, %c0_i32_0 : i32, i32
  }
  func.func @transform_1(%arg0: i32) -> (i32, i32) {
    %c0_i32 = arith.constant 0 : i32
    %c0_i32_0 = arith.constant 0 : i32
    %c0_i32_1 = arith.constant 0 : i32
    return %c0_i32, %c0_i32_0 : i32, i32
  }
  func.func @transform_2(%arg0: i32) -> (i32, i32, i32) {
    %c0_i32 = arith.constant 0 : i32
    %c0_i32_0 = arith.constant 0 : i32
    %c0_i32_1 = arith.constant 0 : i32
    %c0_i32_2 = arith.constant 0 : i32
    return %c0_i32, %c0_i32_0, %c0_i32_1 : i32, i32, i32
  }
  func.func @transform_3(%arg0: i32) -> (i32, i32) {
    %c0_i32 = arith.constant 0 : i32
    %c0_i32_0 = arith.constant 0 : i32
    %c0_i32_1 = arith.constant 0 : i32
    return %c0_i32, %c0_i32_0 : i32, i32
  }
  func.func @transform_4(%arg0: i32) -> (i32, i32, i32, i32) {
    %c0_i32 = arith.constant 0 : i32
    %c0_i32_0 = arith.constant 0 : i32
    %c0_i32_1 = arith.constant 0 : i32
    %c0_i32_2 = arith.constant 0 : i32
    %c0_i32_3 = arith.constant 0 : i32
    return %c0_i32, %c0_i32_0, %c0_i32_1, %c0_i32_2 : i32, i32, i32, i32
  }
  func.func @transform_5(%arg0: i32) -> (i32, i32) {
    %c0_i32 = arith.constant 0 : i32
    %c0_i32_0 = arith.constant 0 : i32
    %c0_i32_1 = arith.constant 0 : i32
    return %c0_i32, %c0_i32_0 : i32, i32
  }
}

</mosaic_0001>

<llo_original>
// kernel: tpu_custom_call.1
$region0: #{tpu_custom_call.1}
  #allocation0 [shape = 'u32[]', space=smem, size = 0x4, offset = 0x4, fixed_abs, tag = 'smem constant byte address 0x4 - core index']
  #allocation1 [shape = 'u32[72,128]{1,0:T(1,128)}', space=vmem, size = 0x9000, scoped, tag = 'internal scratch']
  %s0 = inlined_call_operand.hbm [shape: f32[8,16], index: 0, kind: input, shape index: {}]
  %s1 = inlined_call_operand.hbm [shape: f32[16,32], index: 1, kind: input, shape index: {}]
  %s2 = inlined_call_operand.hbm [shape: f32[4,32,32], index: 2, kind: input, shape index: {}]
  %s3 = inlined_call_operand.hbm [shape: f32[9,32], index: 3, kind: input, shape index: {}]
  %s4 = inlined_call_operand.hbm [shape: f32[2,3,8,32], index: 4, kind: input, shape index: {}]
  %s5 = inlined_call_operand.vmem [shape: f32[8,1], index: 5, kind: output, shape index: {}]
  %s6 = sld [smem:[#allocation0]]
  $region50: #{tpu_custom_call.1} parent=0
    _
  %s8 = ssub.s32 1, %s6
  %s9 = scalar_select 0, %s8, %s6
  $region1: #{tpu_custom_call.1} parent=0
    #allocation2 [shape = 'u8[4096]{0}', space=vmem, size = 0x1000, scoped, tag = 'input window, operand 0, single buffered']
    #allocation3 [shape = 's32[1]{0}', space=sflag, size = 0x4, scoped, tag = 'scoped memory for tpu_custom_call.1']
    #allocation4 [shape = 'u8[8192]{0}', space=vmem, size = 0x2000, scoped, tag = 'input window, operand 1, single buffered']
    #allocation5 [shape = 's32[1]{0}', space=sflag, size = 0x4, scoped, tag = 'scoped memory for tpu_custom_call.1']
    #allocation6 [shape = 'u8[65536]{0}', space=vmem, size = 0x10000, scoped, tag = 'input window, operand 2, single buffered']
    #allocation7 [shape = 'u8[8192]{0}', space=vmem, size = 0x2000, scoped, tag = 'input window, operand 3, single buffered']
    #allocation8 [shape = 's32[1]{0}', space=sflag, size = 0x4, scoped, tag = 'scoped memory for tpu_custom_call.1']
    #allocation9 [shape = 'u8[24576]{0}', space=vmem, size = 0x6000, scoped, tag = 'input window, operand 4, single buffered']
    %10 = vsyncpa [#allocation3], 0
    %11 = vsyncpa [#allocation5], 0
    %12 = vsyncpa [#allocation8], 0
    // Predicated region
    $region2: #{tpu_custom_call.1} parent=1 // pred_check
      _
    $region3: #{tpu_custom_call.1} parent=1 // pred_check_branch
      %14 = sbr.rel (0) target = $region5
    $region4: #{tpu_custom_call.1} parent=1 // pred_region
      %16 = vsyncadd [#allocation3], 0
      %s18 = sshll.u32 %s0, 4
      %s19 = int_to_ptr.hbm [resolvable:$true] %s18
      %s20 = sshll.u32 [#allocation2], 4
      %s21 = int_to_ptr.vmem [resolvable:$true] %s20
      %23 = dma.hbm_to_vmem [thread:$0]  %s19, 128, %s21, [#allocation3]
    $region5: #{tpu_custom_call.1} parent=1 // pred_fallthru
      _
    // Predicated region
    $region6: #{tpu_custom_call.1} parent=1 // pred_check
      _
    $region7: #{tpu_custom_call.1} parent=1 // pred_check_branch
      %25 = sbr.rel (0) target = $region9
    $region8: #{tpu_custom_call.1} parent=1 // pred_region
      %27 = vsyncadd [#allocation5], 0
      %s28 = sshll.u32 %s1, 4
      %s29 = int_to_ptr.hbm [resolvable:$true] %s28
      %s30 = sshll.u32 [#allocation4], 4
      %s31 = int_to_ptr.vmem [resolvable:$true] %s30
      %36 = dma.hbm_to_vmem [thread:$0]  %s29, 256, %s31, [#allocation5], 128, 128, 8
    $region9: #{tpu_custom_call.1} parent=1 // pred_fallthru
      _
    // Predicated region
    $region10: #{tpu_custom_call.1} parent=1 // pred_check
      _
    $region11: #{tpu_custom_call.1} parent=1 // pred_check_branch
      %38 = sbr.rel (0) target = $region13
    $region12: #{tpu_custom_call.1} parent=1 // pred_region
      %40 = vsyncadd [#allocation5], 0
      %s41 = sshll.u32 %s2, 4
      %s42 = int_to_ptr.hbm [resolvable:$true] %s41
      %s43 = sshll.u32 [#allocation6], 4
      %s44 = int_to_ptr.vmem [resolvable:$true] %s43
      %49 = dma.hbm_to_vmem [thread:$0]  %s42, 2048, %s44, [#allocation5], 128, 128, 8
    $region13: #{tpu_custom_call.1} parent=1 // pred_fallthru
      _
    // Predicated region
    $region14: #{tpu_custom_call.1} parent=1 // pred_check
      _
    $region15: #{tpu_custom_call.1} parent=1 // pred_check_branch
      %51 = sbr.rel (0) target = $region17
    $region16: #{tpu_custom_call.1} parent=1 // pred_region
      %53 = vsyncadd [#allocation8], 0
      %s54 = sshll.u32 %s3, 4
      %s55 = int_to_ptr.hbm [resolvable:$true] %s54
      %s56 = sshll.u32 [#allocation7], 4
      %s57 = int_to_ptr.vmem [resolvable:$true] %s56
      %62 = dma.hbm_to_vmem [thread:$0]  %s55, 256, %s57, [#allocation8], 128, 128, 8
    $region17: #{tpu_custom_call.1} parent=1 // pred_fallthru
      _
    // Predicated region
    $region18: #{tpu_custom_call.1} parent=1 // pred_check
      _
    $region19: #{tpu_custom_call.1} parent=1 // pred_check_branch
      %64 = sbr.rel (0) target = $region21
    $region20: #{tpu_custom_call.1} parent=1 // pred_region
      %66 = vsyncadd [#allocation8], 0
      %s67 = sshll.u32 %s4, 4
      %s68 = int_to_ptr.hbm [resolvable:$true] %s67
      %s69 = sshll.u32 [#allocation9], 4
      %s70 = int_to_ptr.vmem [resolvable:$true] %s69
      %75 = dma.hbm_to_vmem [thread:$0]  %s68, 768, %s70, [#allocation8], 128, 128, 8
    $region21: #{tpu_custom_call.1} parent=1 // pred_fallthru
      _
    // Predicated region
    $region22: #{tpu_custom_call.1} parent=1 // pred_check
      _
    $region23: #{tpu_custom_call.1} parent=1 // pred_check_branch
      %77 = sbr.rel (0) target = $region25
    $region24: #{tpu_custom_call.1} parent=1 // pred_region
      %79 = dma.done [#allocation3], 128
    $region25: #{tpu_custom_call.1} parent=1 // pred_fallthru
      _
    // Predicated region
    $region26: #{tpu_custom_call.1} parent=1 // pred_check
      _
    $region27: #{tpu_custom_call.1} parent=1 // pred_check_branch
      %81 = sbr.rel (0) target = $region29
    $region28: #{tpu_custom_call.1} parent=1 // pred_region
      %83 = dma.done [#allocation5], 256
    $region29: #{tpu_custom_call.1} parent=1 // pred_fallthru
      _
    // Predicated region
    $region30: #{tpu_custom_call.1} parent=1 // pred_check
      _
    $region31: #{tpu_custom_call.1} parent=1 // pred_check_branch
      %85 = sbr.rel (0) target = $region33
    $region32: #{tpu_custom_call.1} parent=1 // pred_region
      %87 = dma.done [#allocation5], 2048
    $region33: #{tpu_custom_call.1} parent=1 // pred_fallthru
      _
    // Predicated region
    $region34: #{tpu_custom_call.1} parent=1 // pred_check
      _
    $region35: #{tpu_custom_call.1} parent=1 // pred_check_branch
      %89 = sbr.rel (0) target = $region37
    $region36: #{tpu_custom_call.1} parent=1 // pred_region
      %91 = dma.done [#allocation8], 256
    $region37: #{tpu_custom_call.1} parent=1 // pred_fallthru
      _
    // Predicated region
    $region38: #{tpu_custom_call.1} parent=1 // pred_check
      _
    $region39: #{tpu_custom_call.1} parent=1 // pred_check_branch
      %93 = sbr.rel (0) target = $region41
    $region40: #{tpu_custom_call.1} parent=1 // pred_region
      %95 = dma.done [#allocation8], 768
    $region41: #{tpu_custom_call.1} parent=1 // pred_fallthru
      _
    %v96 = vld [vmem:[#allocation2] sm:$0xff]
    %v97 = vld [vmem:[#allocation7] sm:$0xff]
    %v98 = vld [vmem:[#allocation7 + $0x8] sm:$0x1]
    %v99 = vld [vmem:[#allocation6] sm:$0xff]
    %v100 = vld [vmem:[#allocation6 + $0x8] sm:$0xff]
    %v101 = vld [vmem:[#allocation6 + $0x10] sm:$0xff]
    %v102 = vld [vmem:[#allocation6 + $0x18] sm:$0xff]
    %v103 = vld [vmem:[#allocation6 + $0x20] sm:$0xff]
    %v104 = vld [vmem:[#allocation6 + $0x28] sm:$0xff]
    %v105 = vld [vmem:[#allocation6 + $0x30] sm:$0xff]
    %v106 = vld [vmem:[#allocation6 + $0x38] sm:$0xff]
    %v107 = vld [vmem:[#allocation6 + $0x40] sm:$0xff]
    %v108 = vld [vmem:[#allocation6 + $0x48] sm:$0xff]
    %v109 = vld [vmem:[#allocation6 + $0x50] sm:$0xff]
    %v110 = vld [vmem:[#allocation6 + $0x58] sm:$0xff]
    %v111 = vld [vmem:[#allocation6 + $0x60] sm:$0xff]
    %v112 = vld [vmem:[#allocation6 + $0x68] sm:$0xff]
    %v113 = vld [vmem:[#allocation6 + $0x70] sm:$0xff]
    %v114 = vld [vmem:[#allocation6 + $0x78] sm:$0xff]
    %v115 = vld [vmem:[#allocation9] sm:$0xff]
    %v116 = vld [vmem:[#allocation9 + $0x8] sm:$0xff]
    %v117 = vld [vmem:[#allocation9 + $0x10] sm:$0xff]
    %v118 = vld [vmem:[#allocation9 + $0x18] sm:$0xff]
    %v119 = vld [vmem:[#allocation9 + $0x20] sm:$0xff]
    %v120 = vld [vmem:[#allocation9 + $0x28] sm:$0xff]
    %v121 = vld [vmem:[#allocation4] sm:$0xff]
    %v122 = vld [vmem:[#allocation4 + $0x8] sm:$0xff]
    %v123 = vperm.slane %v97, 0
    %vm124 = vcmask 130048
    %v126 = vsel %vm124, %v96, 0
    %128 = vmatpush.msra.mxu0 0.0
    %129 = vmatpush.msra.mxu0 0.0
    %130 = vmatpush.msra.mxu0 0.0
    %131 = vmatpush.msra.mxu0 0.0
    %132 = vmatpush.msra.mxu0 0.0
    %133 = vmatpush.msra.mxu0 0.0
    %134 = vmatpush.msra.mxu0 0.0
    %135 = vmatpush.msra.mxu0 0.0
    %136 = vmatpush.msra.mxu0 0.0
    %137 = vmatpush.msra.mxu0 0.0
    %138 = vmatpush.msra.mxu0 0.0
    %139 = vmatpush.msra.mxu0 0.0
    %140 = vmatpush.msra.mxu0 0.0
    %141 = vmatpush.msra.mxu0 0.0
    %142 = vmatpush.msra.mxu0 %v122
    %143 = vmatpush.msra.mxu0 %v121
    %144 = vmatmul.f32.gmra.mxu0 %v126
    %v145 = vpop.f32.mrf.mxu0
    %v146 = vadd.f32 %v123, %v145
    %147 = vdwg.mxu0
    %vm148 = vcmask 261120
    %v150 = vsel %vm148, %v146, 0
    %152 = vmatpush.msra.mxu0 0.0
    %153 = vmatpush.msra.mxu0 0.0
    %154 = vmatpush.msra.mxu0 0.0
    %155 = vmatpush.msra.mxu0 0.0
    %156 = vmatpush.msra.mxu0 0.0
    %157 = vmatpush.msra.mxu0 0.0
    %158 = vmatpush.msra.mxu0 0.0
    %159 = vmatpush.msra.mxu0 0.0
    %160 = vmatpush.msra.mxu0 0.0
    %161 = vmatpush.msra.mxu0 0.0
    %162 = vmatpush.msra.mxu0 0.0
    %163 = vmatpush.msra.mxu0 0.0
    %164 = vmatpush.msra.mxu0 %v102
    %165 = vmatpush.msra.mxu0 %v101
    %166 = vmatpush.msra.mxu0 %v100
    %167 = vmatpush.msra.mxu0 %v99
    %168 = vmatmul.f32.gmra.mxu0 %v150
    %v169 = vpop.f32.mrf.mxu0
    %v170 = vadd.f32 0.0, %v169
    %171 = vdwg.mxu0
    %v172 = vadd.f32 %v146, %v170
    %v173 = vperm.slane %v97, 1
    %v174 = vadd.f32 %v172, %v173
    %v175 = vsel %vm148, %v174, 0.0
    %176 = vadd.xlane.f32.xlu0 %v175
    %v177 = vpop.xlane.xlu0 %176
    %v178 = vmul.f32 %v174, %v174
    %v179 = vsel %vm148, %v178, 0.0
    %180 = vadd.xlane.f32.xlu0 %v179
    %v181 = vpop.xlane.xlu0 %180
    %v182 = vmul.f32 %v177, 0.03125
    %v183 = vmul.f32 %v181, 0.03125
    %v184 = vmul.f32 %v182, %v182
    %v185 = vsub.f32 %v183, %v184
    %v186 = vsub.f32 %v174, %v182
    %v187 = vadd.f32 %v185, 1e-05
    %v188 = vrsqrt.pop %v187
    %v189 = vmul.f32 %v188, %v187
    %v190 = vmul.f32 %v189, %v188
    %v191 = vmul.f32 0.5, %v190
    %v192 = vsub.f32 1.5, %v191
    %v193 = vmul.f32 %v188, %v192
    %vm194 = vweird.f32 %v187
    %vm195 = vweird.f32 %v188
    %vm196 = vmor %vm194, %vm195
    %v197 = vsel %vm196, %v188, %v193
    %v198 = vmul.f32 %v186, %v197
    %v199 = vperm.slane %v97, 2
    %v200 = vmul.f32 %v198, %v199
    %v201 = vperm.slane %v97, 3
    %v202 = vadd.f32 %v200, %v201
    %v204 = vsel %vm148, %v202, 0
    %206 = vmatpush.msra.mxu0 0.0
    %207 = vmatpush.msra.mxu0 0.0
    %208 = vmatpush.msra.mxu0 0.0
    %209 = vmatpush.msra.mxu0 0.0
    %210 = vmatpush.msra.mxu0 0.0
    %211 = vmatpush.msra.mxu0 0.0
    %212 = vmatpush.msra.mxu0 0.0
    %213 = vmatpush.msra.mxu0 0.0
    %214 = vmatpush.msra.mxu0 0.0
    %215 = vmatpush.msra.mxu0 0.0
    %216 = vmatpush.msra.mxu0 0.0
    %217 = vmatpush.msra.mxu0 0.0
    %218 = vmatpush.msra.mxu0 %v106
    %219 = vmatpush.msra.mxu0 %v105
    %220 = vmatpush.msra.mxu0 %v104
    %221 = vmatpush.msra.mxu0 %v103
    %222 = vmatmul.f32.gmra.mxu0 %v204
    %v223 = vpop.f32.mrf.mxu0
    %v224 = vadd.f32 0.0, %v223
    %225 = vdwg.mxu0
    %v226 = vadd.f32 %v202, %v224
    %v227 = vperm.slane %v97, 4
    %v228 = vadd.f32 %v226, %v227
    %v229 = vsel %vm148, %v228, 0.0
    %230 = vadd.xlane.f32.xlu0 %v229
    %v231 = vpop.xlane.xlu0 %230
    %v232 = vmul.f32 %v228, %v228
    %v233 = vsel %vm148, %v232, 0.0
    %234 = vadd.xlane.f32.xlu0 %v233
    %v235 = vpop.xlane.xlu0 %234
    %v236 = vmul.f32 %v231, 0.03125
    %v237 = vmul.f32 %v235, 0.03125
    %v238 = vmul.f32 %v236, %v236
    %v239 = vsub.f32 %v237, %v238
    %v240 = vsub.f32 %v228, %v236
    %v241 = vadd.f32 %v239, 1e-05
    %v242 = vrsqrt.pop %v241
    %v243 = vmul.f32 %v242, %v241
    %v244 = vmul.f32 %v243, %v242
    %v245 = vmul.f32 0.5, %v244
    %v246 = vsub.f32 1.5, %v245
    %v247 = vmul.f32 %v242, %v246
    %vm248 = vweird.f32 %v241
    %vm249 = vweird.f32 %v242
    %vm250 = vmor %vm248, %vm249
    %v251 = vsel %vm250, %v242, %v247
    %v252 = vmul.f32 %v240, %v251
    %v253 = vperm.slane %v97, 5
    %v254 = vmul.f32 %v252, %v253
    %v255 = vperm.slane %v97, 6
    %v256 = vadd.f32 %v254, %v255
    %v258 = vrot.slane %v256, 1
    %v259 = vrot.slane %v256, 2
    %v260 = vrot.slane %v256, 3
    %v261 = vrot.slane %v256, 4
    %v262 = vrot.slane %v256, 5
    %v263 = vrot.slane %v256, 6
    %v264 = vrot.slane %v256, 7
    %v265 = vperm.slane %v256, 0
    %v266 = vperm.slane %v258, 0
    %v267 = vperm.slane %v259, 0
    %v268 = vperm.slane %v260, 0
    %v269 = vperm.slane %v261, 0
    %v270 = vperm.slane %v262, 0
    %v271 = vperm.slane %v263, 0
    %v272 = vperm.slane %v264, 0
    %v281 = vmul.f32 %v265, %v115
    %v282 = vmul.f32 %v266, %v115
    %v283 = vmul.f32 %v267, %v115
    %v284 = vmul.f32 %v268, %v115
    %v285 = vmul.f32 %v269, %v115
    %v286 = vmul.f32 %v270, %v115
    %v287 = vmul.f32 %v271, %v115
    %v288 = vmul.f32 %v272, %v115
    %v290 = vsel %vm148, %v281, 0
    %v293 = vsel %vm148, %v282, 0
    %v296 = vsel %vm148, %v283, 0
    %v299 = vsel %vm148, %v284, 0
    %v302 = vsel %vm148, %v285, 0
    %v305 = vsel %vm148, %v286, 0
    %v308 = vsel %vm148, %v287, 0
    %v311 = vsel %vm148, %v288, 0
    %313 = vmatpush.msra.mxu0 0.0
    %314 = vmatpush.msra.mxu0 0.0
    %315 = vmatpush.msra.mxu0 0.0
    %316 = vmatpush.msra.mxu0 0.0
    %317 = vmatpush.msra.mxu0 0.0
    %318 = vmatpush.msra.mxu0 0.0
    %319 = vmatpush.msra.mxu0 0.0
    %320 = vmatpush.msra.mxu0 0.0
    %321 = vmatpush.msra.mxu0 0.0
    %322 = vmatpush.msra.mxu0 0.0
    %323 = vmatpush.msra.mxu0 0.0
    %324 = vmatpush.msra.mxu0 0.0
    %325 = vmatpush.msra.mxu0 %v110
    %326 = vmatpush.msra.mxu0 %v109
    %327 = vmatpush.msra.mxu0 %v108
    %328 = vmatpush.msra.mxu0 %v107
    %329 = vmatmul.f32.gmra.mxu0 %v290
    %v330 = vpop.f32.mrf.mxu0
    %v331 = vadd.f32 0.0, %v330
    %332 = vmatmul.f32.gmra.mxu0 %v293
    %v333 = vpop.f32.mrf.mxu0
    %v334 = vadd.f32 0.0, %v333
    %335 = vmatmul.f32.gmra.mxu0 %v296
    %v336 = vpop.f32.mrf.mxu0
    %v337 = vadd.f32 0.0, %v336
    %338 = vmatmul.f32.gmra.mxu0 %v299
    %v339 = vpop.f32.mrf.mxu0
    %v340 = vadd.f32 0.0, %v339
    %341 = vmatmul.f32.gmra.mxu0 %v302
    %v342 = vpop.f32.mrf.mxu0
    %v343 = vadd.f32 0.0, %v342
    %344 = vmatmul.f32.gmra.mxu0 %v305
    %v345 = vpop.f32.mrf.mxu0
    %v346 = vadd.f32 0.0, %v345
    %347 = vmatmul.f32.gmra.mxu0 %v308
    %v348 = vpop.f32.mrf.mxu0
    %v349 = vadd.f32 0.0, %v348
    %350 = vmatmul.f32.gmra.mxu0 %v311
    %v351 = vpop.f32.mrf.mxu0
    %v352 = vadd.f32 0.0, %v351
    %353 = vdwg.mxu0
    %v354 = vmul.f32 %v331, %v116
    %v355 = vmul.f32 %v334, %v116
    %v356 = vmul.f32 %v337, %v116
    %v357 = vmul.f32 %v340, %v116
    %v358 = vmul.f32 %v343, %v116
    %v359 = vmul.f32 %v346, %v116
    %v360 = vmul.f32 %v349, %v116
    %v361 = vmul.f32 %v352, %v116
    %v362 = vadd.f32 %v354, %v117
    %v363 = vadd.f32 %v355, %v117
    %v364 = vadd.f32 %v356, %v117
    %v365 = vadd.f32 %v357, %v117
    %v366 = vadd.f32 %v358, %v117
    %v367 = vadd.f32 %v359, %v117
    %v368 = vadd.f32 %v360, %v117
    %v369 = vadd.f32 %v361, %v117
    %v370 = vmax.f32 %v362, 0.0
    %v371 = vmax.f32 %v363, 0.0
    %v372 = vmax.f32 %v364, 0.0
    %v373 = vmax.f32 %v365, 0.0
    %v374 = vmax.f32 %v366, 0.0
    %v375 = vmax.f32 %v367, 0.0
    %v376 = vmax.f32 %v368, 0.0
    %v377 = vmax.f32 %v369, 0.0
    %v378 = vmul.f32 %v370, %v118
    %v379 = vmul.f32 %v371, %v118
    %v380 = vmul.f32 %v372, %v118
    %v381 = vmul.f32 %v373, %v118
    %v382 = vmul.f32 %v374, %v118
    %v383 = vmul.f32 %v375, %v118
    %v384 = vmul.f32 %v376, %v118
    %v385 = vmul.f32 %v377, %v118
    %v387 = vsel %vm148, %v378, 0
    %v390 = vsel %vm148, %v379, 0
    %v393 = vsel %vm148, %v380, 0
    %v396 = vsel %vm148, %v381, 0
    %v399 = vsel %vm148, %v382, 0
    %v402 = vsel %vm148, %v383, 0
    %v405 = vsel %vm148, %v384, 0
    %v408 = vsel %vm148, %v385, 0
    %410 = vmatpush.msra.mxu0 0.0
    %411 = vmatpush.msra.mxu0 0.0
    %412 = vmatpush.msra.mxu0 0.0
    %413 = vmatpush.msra.mxu0 0.0
    %414 = vmatpush.msra.mxu0 0.0
    %415 = vmatpush.msra.mxu0 0.0
    %416 = vmatpush.msra.mxu0 0.0
    %417 = vmatpush.msra.mxu0 0.0
    %418 = vmatpush.msra.mxu0 0.0
    %419 = vmatpush.msra.mxu0 0.0
    %420 = vmatpush.msra.mxu0 0.0
    %421 = vmatpush.msra.mxu0 0.0
    %422 = vmatpush.msra.mxu0 %v114
    %423 = vmatpush.msra.mxu0 %v113
    %424 = vmatpush.msra.mxu0 %v112
    %425 = vmatpush.msra.mxu0 %v111
    %426 = vmatmul.f32.gmra.mxu0 %v387
    %v427 = vpop.f32.mrf.mxu0
    %v428 = vadd.f32 0.0, %v427
    %429 = vmatmul.f32.gmra.mxu0 %v390
    %v430 = vpop.f32.mrf.mxu0
    %v431 = vadd.f32 0.0, %v430
    %432 = vmatmul.f32.gmra.mxu0 %v393
    %v433 = vpop.f32.mrf.mxu0
    %v434 = vadd.f32 0.0, %v433
    %435 = vmatmul.f32.gmra.mxu0 %v396
    %v436 = vpop.f32.mrf.mxu0
    %v437 = vadd.f32 0.0, %v436
    %438 = vmatmul.f32.gmra.mxu0 %v399
    %v439 = vpop.f32.mrf.mxu0
    %v440 = vadd.f32 0.0, %v439
    %441 = vmatmul.f32.gmra.mxu0 %v402
    %v442 = vpop.f32.mrf.mxu0
    %v443 = vadd.f32 0.0, %v442
    %444 = vmatmul.f32.gmra.mxu0 %v405
    %v445 = vpop.f32.mrf.mxu0
    %v446 = vadd.f32 0.0, %v445
    %447 = vmatmul.f32.gmra.mxu0 %v408
    %v448 = vpop.f32.mrf.mxu0
    %v449 = vadd.f32 0.0, %v448
    %450 = vdwg.mxu0
    %v451 = vmul.f32 %v428, %v119
    %v452 = vmul.f32 %v431, %v119
    %v453 = vmul.f32 %v434, %v119
    %v454 = vmul.f32 %v437, %v119
    %v455 = vmul.f32 %v440, %v119
    %v456 = vmul.f32 %v443, %v119
    %v457 = vmul.f32 %v446, %v119
    %v458 = vmul.f32 %v449, %v119
    %v459 = vadd.f32 %v451, %v120
    %v460 = vadd.f32 %v452, %v120
    %v461 = vadd.f32 %v453, %v120
    %v462 = vadd.f32 %v454, %v120
    %v463 = vadd.f32 %v455, %v120
    %v464 = vadd.f32 %v456, %v120
    %v465 = vadd.f32 %v457, %v120
    %v466 = vadd.f32 %v458, %v120
    %v467 = vmax.f32 %v459, 0.0
    %v468 = vmax.f32 %v460, 0.0
    %v469 = vmax.f32 %v461, 0.0
    %v470 = vmax.f32 %v462, 0.0
    %v471 = vmax.f32 %v463, 0.0
    %v472 = vmax.f32 %v464, 0.0
    %v473 = vmax.f32 %v465, 0.0
    %v474 = vmax.f32 %v466, 0.0
    %v475 = vsel %vm148, %v467, 0.0
    %v476 = vrot.slane %v475, 4
    %v477 = vadd.f32 %v475, %v476
    %v478 = vrot.slane %v477, 2
    %v479 = vadd.f32 %v477, %v478
    %v480 = vrot.slane %v479, 1
    %v481 = vadd.f32 %v479, %v480
    %v482 = vsel %vm148, %v468, 0.0
    %v483 = vrot.slane %v482, 4
    %v484 = vadd.f32 %v482, %v483
    %v485 = vrot.slane %v484, 2
    %v486 = vadd.f32 %v484, %v485
    %v487 = vrot.slane %v486, 1
    %v488 = vadd.f32 %v486, %v487
    %v489 = vsel %vm148, %v469, 0.0
    %v490 = vrot.slane %v489, 4
    %v491 = vadd.f32 %v489, %v490
    %v492 = vrot.slane %v491, 2
    %v493 = vadd.f32 %v491, %v492
    %v494 = vrot.slane %v493, 1
    %v495 = vadd.f32 %v493, %v494
    %v496 = vsel %vm148, %v470, 0.0
    %v497 = vrot.slane %v496, 4
    %v498 = vadd.f32 %v496, %v497
    %v499 = vrot.slane %v498, 2
    %v500 = vadd.f32 %v498, %v499
    %v501 = vrot.slane %v500, 1
    %v502 = vadd.f32 %v500, %v501
    %v503 = vsel %vm148, %v471, 0.0
    %v504 = vrot.slane %v503, 4
    %v505 = vadd.f32 %v503, %v504
    %v506 = vrot.slane %v505, 2
    %v507 = vadd.f32 %v505, %v506
    %v508 = vrot.slane %v507, 1
    %v509 = vadd.f32 %v507, %v508
    %v510 = vsel %vm148, %v472, 0.0
    %v511 = vrot.slane %v510, 4
    %v512 = vadd.f32 %v510, %v511
    %v513 = vrot.slane %v512, 2
    %v514 = vadd.f32 %v512, %v513
    %v515 = vrot.slane %v514, 1
    %v516 = vadd.f32 %v514, %v515
    %v517 = vsel %vm148, %v473, 0.0
    %v518 = vrot.slane %v517, 4
    %v519 = vadd.f32 %v517, %v518
    %v520 = vrot.slane %v519, 2
    %v521 = vadd.f32 %v519, %v520
    %v522 = vrot.slane %v521, 1
    %v523 = vadd.f32 %v521, %v522
    %v524 = vsel %vm148, %v474, 0.0
    %v525 = vrot.slane %v524, 4
    %v526 = vadd.f32 %v524, %v525
    %v527 = vrot.slane %v526, 2
    %v528 = vadd.f32 %v526, %v527
    %v529 = vrot.slane %v528, 1
    %v530 = vadd.f32 %v528, %v529
    %v531 = vrcp.pop 8.0
    %v532 = vmul.f32 8.0, %v531
    %v533 = vsub.f32 1.0, %v532
    %v534 = vmul.f32 %v531, %v533
    %v535 = vadd.f32 %v531, %v534
    %vm536 = vweird.f32 %v531
    %v537 = vsel %vm536, %v531, %v535
    %v538 = vmul.f32 %v481, %v537
    %v539 = vmul.f32 %v488, %v537
    %v540 = vmul.f32 %v495, %v537
    %v541 = vmul.f32 %v502, %v537
    %v542 = vmul.f32 %v509, %v537
    %v543 = vmul.f32 %v516, %v537
    %v544 = vmul.f32 %v523, %v537
    %v545 = vmul.f32 %v530, %v537
    %v546 = vperm.slane %v97, 7
    %v547 = vmul.f32 %v538, %v546
    %v548 = vmul.f32 %v539, %v546
    %v549 = vmul.f32 %v540, %v546
    %v550 = vmul.f32 %v541, %v546
    %v551 = vmul.f32 %v542, %v546
    %v552 = vmul.f32 %v543, %v546
    %v553 = vmul.f32 %v544, %v546
    %v554 = vmul.f32 %v545, %v546
    %v563 = vrot.slane %v548, 7
    %vm564 = vcmask 1041409
    %v565 = vsel %vm564, %v563, %v547
    %v566 = vrot.slane %v549, 6
    %vm567 = vcmask 1042434
    %v568 = vsel %vm567, %v566, %v565
    %v569 = vrot.slane %v550, 5
    %vm570 = vcmask 1043459
    %v571 = vsel %vm570, %v569, %v568
    %v572 = vrot.slane %v551, 4
    %vm573 = vcmask 1044484
    %v574 = vsel %vm573, %v572, %v571
    %v575 = vrot.slane %v552, 3
    %vm576 = vcmask 1045509
    %v577 = vsel %vm576, %v575, %v574
    %v578 = vrot.slane %v553, 2
    %vm579 = vcmask 1046534
    %v580 = vsel %vm579, %v578, %v577
    %v581 = vrot.slane %v554, 1
    %vm582 = vcmask 1047559
    %v583 = vsel %vm582, %v581, %v580
    %v585 = vsel %vm148, %v583, 0.0
    %586 = vadd.xlane.f32.xlu0 %v585
    %v587 = vpop.xlane.xlu0 %586
    %v588 = vperm.slane %v98, 0
    %v589 = vadd.f32 %v587, %v588
    %vm590 = vcmask 7168
    %591 = vst.msk [vmem:[%s5] sm:$0xff] %vm590, %v589
    // Predicated region
    $region42: #{tpu_custom_call.1} parent=1 // pred_check
      _
    $region43: #{tpu_custom_call.1} parent=1 // pred_check_branch
      %593 = sbr.rel (0) target = $region45
    $region44: #{tpu_custom_call.1} parent=1 // pred_region
      _
    $region45: #{tpu_custom_call.1} parent=1 // pred_fallthru
      _
    // Predicated region
    $region46: #{tpu_custom_call.1} parent=1 // pred_check
      _
    $region47: #{tpu_custom_call.1} parent=1 // pred_check_branch
      %595 = sbr.rel (0) target = $region49
    $region48: #{tpu_custom_call.1} parent=1 // pred_region
      _
    $region49: #{tpu_custom_call.1} parent=1 // pred_fallthru
      _
    %596 = vsyncpa [#allocation3], 1
    %597 = vsyncpa [#allocation5], 1
    %598 = vsyncpa [#allocation8], 1

</llo_original>
